<compile_context>
chip_gen: v7x
topology: tpu7x:2x2x1
jax: 0.10.0
libtpu: 0.0.40
codegen_flags: <defaults>
</compile_context>

<pallas_src>
import functools

import jax
import jax.numpy as jnp
from jax.experimental import pallas as pl
from jax.experimental.pallas import tpu as pltpu


def _round_up(x, m):
    return ((x + m - 1) // m) * m


def _vmem_capacity_bytes():
    """Per-core VMEM capacity; falls back to the smallest (v7x, 64 MiB)."""
    try:
        return int(pltpu.get_tpu_info().vmem_capacity_bytes)
    except Exception:
        return 64 * 1024 * 1024


def _ce_ls_kernel(pred_ref, target_ref, out_ref, acc_ref, *,
                  class_num, label_smooth, eps, total_batch, tile_b,
                  tiles_per_shard):
    p = pl.program_id(0)   # shard (parallel -> one TensorCore on megacore parts)
    i = pl.program_id(1)   # batch tile within the shard (arbitrary / reduction)

    @pl.when(i == 0)
    def _init():
        acc_ref[...] = jnp.zeros_like(acc_ref)

    pred_nat = pred_ref[...]                         # (TILE_B, C) native dtype
    tgt = target_ref[...]                            # (TILE_B, 1) int32
    tb, c = pred_nat.shape

    # Single f32 materialization of the block (counted in the VMEM budget);
    # feeds exp, picked and sum_pred below.
    pred32 = pred_nat.astype(jnp.float32)

    # Max-stabilized row logsumexp.
    m = jnp.max(pred32, axis=1, keepdims=True)                       # (TILE_B, 1)
    sum_exp = jnp.sum(jnp.exp(pred32 - m), axis=1, keepdims=True)    # (TILE_B, 1)
    lse = m + jnp.log(sum_exp)                                       # (TILE_B, 1)

    # pred.gather(1, target) via lane-iota select (no gather on TPU).
    col = jax.lax.broadcasted_iota(jnp.int32, (tb, c), 1)
    picked = jnp.sum(jnp.where(col == tgt, pred32, 0.0),
                     axis=1, keepdims=True)                          # (TILE_B, 1)

    if label_smooth is not None:
        # smoothed = clamp(one_hot, lo, hi) = lo + (hi - lo) * one_hot  (lo <= hi
        # for any sane label_smooth < (C-1)/C), and logprobs = pred - lse, so
        #   loss = -sum(smoothed * logprobs)
        #        = (lo*C + hi - lo) * lse - lo * sum(pred) - (hi - lo) * picked
        lo = float(label_smooth) / (class_num - 1)
        hi = 1.0 - float(label_smooth)
        sum_pred = jnp.sum(pred32, axis=1, keepdims=True)
        loss = ((lo * class_num + (hi - lo)) * lse
                - lo * sum_pred - (hi - lo) * picked)
    else:
        # loss = -picked + log(sum(exp(pred + eps)))
        #      = lse + eps - picked        (exact, overflow-safe)
        loss = lse + jnp.float32(eps) - picked

    # Mask padded rows of the last (partial) batch tile.
    base = (p * tiles_per_shard + i) * tile_b
    row = jax.lax.broadcasted_iota(jnp.int32, (tb, 1), 0) + base
    loss = jnp.where(row < total_batch, loss, 0.0)

    # Pure VPU add each step; no cross-sublane reduce / SMEM round-trip here.
    acc_ref[...] += loss

    @pl.when(i == pl.num_programs(1) - 1)
    def _finalize():
        out_ref[0, 0] = jnp.sum(acc_ref[...])        # one reduce per shard


def cross_entropy_loss_ls(pred, target, *, label_smooth=None, class_num=5,
                          eps=1e-12, tile_b=None):
    """JAX/Pallas equivalent of CrossEntropyLoss_LS.forward(pred, target)."""
    b, c = pred.shape
    assert c == class_num, "pred's class dim must equal class_num"
    if label_smooth is not None:
        assert class_num > 1, "label smoothing needs class_num > 1"

    itemsize = jnp.dtype(pred.dtype).itemsize
    vmem_cap = _vmem_capacity_bytes()

    # Live VMEM bytes per batch row:
    #   * 2x native-dtype input block (double-buffered DMA)
    #   * ~5 block-sized f32 temporaries (cast, exp arg, exp, select, slack)
    #   * ~6 lane-padded (tile_b, 1) f32 columns (m / lse / picked / loss / acc)
    #     at 512 B/row each, plus the double-buffered int32 target column.
    per_row = 2 * c * itemsize + 5 * c * 4 + 6 * 512 + 2 * 4

    if tile_b is None:
        budget = vmem_cap // 4            # headroom for pipelining & compiler
        rows = max(8, (budget // per_row) // 8 * 8)
        rows = min(rows, 32768)           # sanity guard only; rarely binds
        tile_b = min(_round_up(b, 8), rows)
    tile_b = max(8, _round_up(int(tile_b), 8))

    # Split batch tiles across a leading "parallel" axis: 2 shards map onto the
    # two TensorCores on v7x / megacore parts; on 1-TC chips it is an outer
    # serial loop.  Each shard gets its own accumulator + output slot.
    n_tiles_single = _round_up(b, tile_b) // tile_b
    num_shards = 2 if n_tiles_single >= 2 else 1

    b_pad = _round_up(b, num_shards * tile_b)
    tiles_per_shard = b_pad // (num_shards * tile_b)

    target2d = target.astype(jnp.int32).reshape(b, 1)
    if b_pad != b:
        pred = jnp.pad(pred, ((0, b_pad - b), (0, 0)))
        target2d = jnp.pad(target2d, ((0, b_pad - b), (0, 0)))

    kernel = functools.partial(
        _ce_ls_kernel, class_num=class_num, label_smooth=label_smooth,
        eps=eps, total_batch=b, tile_b=tile_b, tiles_per_shard=tiles_per_shard)

    # Explicit scoped-VMEM limit from the same footprint formula (generation
    # aware: never exceeds the queried physical capacity, never relies on the
    # 16/32 MiB scoped defaults).
    need = per_row * tile_b + (2 << 20)
    vmem_limit = int(min(vmem_cap - (4 << 20), max(need, 32 << 20)))

    partials = pl.pallas_call(
        kernel,
        out_shape=jax.ShapeDtypeStruct((num_shards, 1), jnp.float32),
        grid=(num_shards, tiles_per_shard),
        in_specs=[
            pl.BlockSpec((tile_b, c),
                         lambda p, i: (p * tiles_per_shard + i, 0)),   # pred
            pl.BlockSpec((tile_b, 1),
                         lambda p, i: (p * tiles_per_shard + i, 0)),   # target
        ],
        out_specs=pl.BlockSpec((1, 1), lambda p, i: (p, 0),
                               memory_space=pltpu.MemorySpace.SMEM),
        scratch_shapes=[pltpu.VMEM((tile_b, 1), jnp.float32)],
        compiler_params=pltpu.CompilerParams(
            dimension_semantics=("parallel", "arbitrary"),
            vmem_limit_bytes=vmem_limit),
    )(pred, target2d)

    # Mean over the total batch; per-shard partials summed here (cheap scalar).
    return jnp.sum(partials) / jnp.float32(b)


def _reference(pred, target, label_smooth, class_num, eps):
    """Pure-JAX reference mirroring the PyTorch module."""
    pred = pred.astype(jnp.float32)
    if label_smooth is not None:
        logprobs = jax.nn.log_softmax(pred, axis=1)
        oh = jax.nn.one_hot(target, class_num, dtype=jnp.float32)
        oh = jnp.clip(oh, label_smooth / (class_num - 1), 1.0 - label_smooth)
        loss = -jnp.sum(oh * logprobs, axis=1)
    else:
        picked = jnp.take_along_axis(pred, target[:, None], axis=1)[:, 0]
        loss = -picked + jnp.log(jnp.sum(jnp.exp(pred + eps), axis=1))
    return jnp.mean(loss)


if __name__ == "__main__":
    class_num = 5

    key = jax.random.PRNGKey(0)
    kp, kt = jax.random.split(key)

    # Case 1: small batch, f32, both branches (single tile, single shard).
    pred = jax.random.normal(kp, (8, class_num), dtype=jnp.float32)
    target = jax.random.randint(kt, (8,), 0, class_num, dtype=jnp.int32)

    loss_ls = cross_entropy_loss_ls(pred, target, label_smooth=0.1,
                                    class_num=class_num)
    loss_plain = cross_entropy_loss_ls(pred, target, label_smooth=None,
                                       class_num=class_num)
    jax.block_until_ready((loss_ls, loss_plain))

    ref_ls = _reference(pred, target, 0.1, class_num, 1e-12)
    ref_plain = _reference(pred, target, None, class_num, 1e-12)
    assert jnp.allclose(loss_ls, ref_ls, atol=1e-5), (loss_ls, ref_ls)
    assert jnp.allclose(loss_plain, ref_plain, atol=1e-5), (loss_plain, ref_plain)

    # Case 2: bf16 input (streamed natively), ragged batch -> 2 shards x 2
    # tiles with padding mask; mean over the full batch.
    kp2, kt2 = jax.random.split(kt)
    pred2 = jax.random.normal(kp2, (37, class_num), dtype=jnp.bfloat16)
    target2 = jax.random.randint(kt2, (37,), 0, class_num, dtype=jnp.int32)

    loss2_ls = cross_entropy_loss_ls(pred2, target2, label_smooth=0.1,
                                     class_num=class_num, tile_b=16)
    loss2_plain = cross_entropy_loss_ls(pred2, target2, label_smooth=None,
                                        class_num=class_num, tile_b=16)
    jax.block_until_ready((loss2_ls, loss2_plain))

    ref2_ls = _reference(pred2, target2, 0.1, class_num, 1e-12)
    ref2_plain = _reference(pred2, target2, None, class_num, 1e-12)
    assert jnp.allclose(loss2_ls, ref2_ls, atol=1e-4), (loss2_ls, ref2_ls)
    assert jnp.allclose(loss2_plain, ref2_plain, atol=1e-4), (loss2_plain, ref2_plain)

    print("KERNEL_OK")
</pallas_src>

<mosaic_0001>
module attributes {stable_mosaic.version = 11 : i64} {
  func.func @_ce_ls_kernel(%arg0: i32, %arg1: i32, %arg2: memref<8x5xf32, #tpu.memory_space<vmem>>, %arg3: memref<8x1xi32, #tpu.memory_space<vmem>>, %arg4: memref<1x1xf32, #tpu.memory_space<smem>>, %arg5: memref<8x1xf32, #tpu.memory_space<vmem>>) attributes {dimension_semantics = [#tpu.dimension_semantics<parallel>, #tpu.dimension_semantics<arbitrary>], iteration_bounds = array<i64: 1, 1>, scalar_prefetch = 0 : i64, scratch_operands = 1 : i64, tpu.core_type = #tpu.core_type<tc>, window_params = [{transform_indices = @transform_0, window_bounds = array<i64: 8, 5>}, {transform_indices = @transform_1, window_bounds = array<i64: 8, 1>}, {transform_indices = @transform_2, window_bounds = array<i64: 1, 1>}]} {
    %c0_i32 = arith.constant 0 : i32
    %0 = arith.cmpi eq, %arg1, %c0_i32 : i32
    %1 = arith.extui %0 : i1 to i32
    %c0_i32_0 = arith.constant 0 : i32
    %2 = arith.cmpi ne, %1, %c0_i32_0 : i32
    scf.if %2 {
      %cst_19 = arith.constant 0.000000e+00 : f32
      %47 = vector.broadcast %cst_19 : f32 to vector<8x1xf32>
      %c0_20 = arith.constant 0 : index
      %c0_21 = arith.constant 0 : index
      %48 = vector.load %arg5[%c0_20, %c0_21] : memref<8x1xf32, #tpu.memory_space<vmem>>, vector<8x1xf32>
      tpu.vector_store %arg5[%c0_20, %c0_21], %47 {strides = array<i32>} : memref<8x1xf32, #tpu.memory_space<vmem>>, vector<8x1xf32>,
    } else {
    }
    %c0 = arith.constant 0 : index
    %c0_1 = arith.constant 0 : index
    %3 = vector.load %arg2[%c0, %c0_1] : memref<8x5xf32, #tpu.memory_space<vmem>>, vector<8x5xf32>
    %c0_2 = arith.constant 0 : index
    %c0_3 = arith.constant 0 : index
    %4 = vector.load %arg3[%c0_2, %c0_3] : memref<8x1xi32, #tpu.memory_space<vmem>>, vector<8x1xi32>
    %cst = arith.constant dense<0xFF800000> : vector<8xf32>
    %5 = vector.multi_reduction <maximumf>, %3, %cst [1] : vector<8x5xf32> to vector<8xf32>
    %6 = vector.shape_cast %5 : vector<8xf32> to vector<8x1xf32>
    %7 = vector.broadcast %6 : vector<8x1xf32> to vector<8x5xf32>
    %8 = arith.subf %3, %7 : vector<8x5xf32>
    %9 = math.exp %8 : vector<8x5xf32>
    %cst_4 = arith.constant dense<0.000000e+00> : vector<8xf32>
    %10 = vector.multi_reduction <add>, %9, %cst_4 [1] : vector<8x5xf32> to vector<8xf32>
    %11 = vector.shape_cast %10 : vector<8xf32> to vector<8x1xf32>
    %12 = math.log %11 : vector<8x1xf32>
    %13 = arith.addf %6, %12 : vector<8x1xf32>
    %14 = tpu.iota {dimensions = array<i32: 1>} : vector<8x5xi32>
    %15 = vector.broadcast %4 : vector<8x1xi32> to vector<8x5xi32>
    %16 = arith.cmpi eq, %14, %15 : vector<8x5xi32>
    %cst_5 = arith.constant 0.000000e+00 : f32
    %17 = vector.broadcast %cst_5 : f32 to vector<8x5xf32>
    %18 = arith.select %16, %3, %17 : vector<8x5xi1>, vector<8x5xf32>
    %cst_6 = arith.constant dense<0.000000e+00> : vector<8xf32>
    %19 = vector.multi_reduction <add>, %18, %cst_6 [1] : vector<8x5xf32> to vector<8xf32>
    %20 = vector.shape_cast %19 : vector<8xf32> to vector<8x1xf32>
    %cst_7 = arith.constant dense<0.000000e+00> : vector<8xf32>
    %21 = vector.multi_reduction <add>, %3, %cst_7 [1] : vector<8x5xf32> to vector<8xf32>
    %22 = vector.shape_cast %21 : vector<8xf32> to vector<8x1xf32>
    %cst_8 = arith.constant 1.000000e+00 : f32
    %23 = vector.broadcast %cst_8 : f32 to vector<8x1xf32>
    %24 = arith.mulf %23, %13 : vector<8x1xf32>
    %cst_9 = arith.constant 2.500000e-02 : f32
    %25 = vector.broadcast %cst_9 : f32 to vector<8x1xf32>
    %26 = arith.mulf %25, %22 : vector<8x1xf32>
    %27 = arith.subf %24, %26 : vector<8x1xf32>
    %cst_10 = arith.constant 8.750000e-01 : f32
    %28 = vector.broadcast %cst_10 : f32 to vector<8x1xf32>
    %29 = arith.mulf %28, %20 : vector<8x1xf32>
    %30 = arith.subf %27, %29 : vector<8x1xf32>
    %c1_i32 = arith.constant 1 : i32
    %31 = arith.muli %arg0, %c1_i32 : i32
    %32 = arith.addi %31, %arg1 : i32
    %c8_i32 = arith.constant 8 : i32
    %33 = arith.muli %32, %c8_i32 : i32
    %34 = tpu.iota {dimensions = array<i32: 0>} : vector<8x1xi32>
    %35 = vector.broadcast %33 : i32 to vector<8x1xi32>
    %36 = arith.addi %34, %35 : vector<8x1xi32>
    %c8_i32_11 = arith.constant 8 : i32
    %37 = vector.broadcast %c8_i32_11 : i32 to vector<8x1xi32>
    %38 = arith.cmpi slt, %36, %37 : vector<8x1xi32>
    %cst_12 = arith.constant 0.000000e+00 : f32
    %39 = vector.broadcast %cst_12 : f32 to vector<8x1xf32>
    %40 = arith.select %38, %30, %39 : vector<8x1xi1>, vector<8x1xf32>
    %c0_13 = arith.constant 0 : index
    %c0_14 = arith.constant 0 : index
    %41 = vector.load %arg5[%c0_13, %c0_14] : memref<8x1xf32, #tpu.memory_space<vmem>>, vector<8x1xf32>
    %42 = arith.addf %41, %40 : vector<8x1xf32>
    %c0_15 = arith.constant 0 : index
    %c0_16 = arith.constant 0 : index
    %43 = vector.load %arg5[%c0_15, %c0_16] : memref<8x1xf32, #tpu.memory_space<vmem>>, vector<8x1xf32>
    tpu.vector_store %arg5[%c0_15, %c0_16], %42 {strides = array<i32>} : memref<8x1xf32, #tpu.memory_space<vmem>>, vector<8x1xf32>,
    %c0_i32_17 = arith.constant 0 : i32
    %44 = arith.cmpi eq, %arg1, %c0_i32_17 : i32
    %45 = arith.extui %44 : i1 to i32
    %c0_i32_18 = arith.constant 0 : i32
    %46 = arith.cmpi ne, %45, %c0_i32_18 : i32
    scf.if %46 {
      %c0_19 = arith.constant 0 : index
      %c0_20 = arith.constant 0 : index
      %47 = vector.load %arg5[%c0_19, %c0_20] : memref<8x1xf32, #tpu.memory_space<vmem>>, vector<8x1xf32>
      %48 = vector.shape_cast %47 : vector<8x1xf32> to vector<1x8x1xf32>
      %cst_21 = arith.constant dense<0.000000e+00> : vector<1xf32>
      %49 = vector.multi_reduction <add>, %48, %cst_21 [1, 2] : vector<1x8x1xf32> to vector<1xf32>
      %50 = vector.shape_cast %49 : vector<1xf32> to vector<1x1x1xf32>
      %51 = vector.extract %50[0, 0, 0] : f32 from vector<1x1x1xf32>
      %c0_22 = arith.constant 0 : index
      %c0_23 = arith.constant 0 : index
      %52 = memref.load %arg4[%c0_22, %c0_23] : memref<1x1xf32, #tpu.memory_space<smem>>
      memref.store %51, %arg4[%c0_22, %c0_23] : memref<1x1xf32, #tpu.memory_space<smem>>
    } else {
    }
    return
  }
  func.func @transform_0(%arg0: i32, %arg1: i32) -> (i32, i32) {
    %c1_i32 = arith.constant 1 : i32
    %0 = arith.muli %arg0, %c1_i32 : i32
    %1 = arith.addi %0, %arg1 : i32
    %c0_i32 = arith.constant 0 : i32
    %c0_i32_0 = arith.constant 0 : i32
    return %1, %c0_i32 : i32, i32
  }
  func.func @transform_1(%arg0: i32, %arg1: i32) -> (i32, i32) {
    %c1_i32 = arith.constant 1 : i32
    %0 = arith.muli %arg0, %c1_i32 : i32
    %1 = arith.addi %0, %arg1 : i32
    %c0_i32 = arith.constant 0 : i32
    %c0_i32_0 = arith.constant 0 : i32
    return %1, %c0_i32 : i32, i32
  }
  func.func @transform_2(%arg0: i32, %arg1: i32) -> (i32, i32) {
    %c0_i32 = arith.constant 0 : i32
    %c0_i32_0 = arith.constant 0 : i32
    return %arg0, %c0_i32 : i32, i32
  }
}

</mosaic_0001>

<llo_original>
// kernel: tpu_custom_call.1
$region0: #{tpu_custom_call.1}
  #allocation0 [shape = 'u32[]', space=smem, size = 0x4, offset = 0x4, fixed_abs, tag = 'smem constant byte address 0x4 - core index']
  #allocation1 [shape = 'u32[144,128]{1,0:T(1,128)}', space=vmem, size = 0x12000, scoped, tag = 'internal scratch']
  #allocation2 [shape = 'f32[8,1]{1,0:T(8,128)}', space=vmem, size = 0x1000, scoped, tag = 'scratch operand']
  %s0 = inlined_call_operand.vmem [shape: f32[8,5], index: 0, kind: input, shape index: {}]
  %s1 = inlined_call_operand.vmem [shape: s32[8,1], index: 1, kind: input, shape index: {}]
  %s2 = inlined_call_operand.hbm [shape: f32[1,1], index: 2, kind: output, shape index: {}]
  %s3 = sld [smem:[#allocation0]]
  $region26: #{tpu_custom_call.1} parent=0
    _
  %s5 = ssub.s32 1, %s3
  %s6 = scalar_select 0, %s5, %s3
  $region1: #{tpu_custom_call.1} parent=0
    #allocation3 [shape = 'u8[512]{0}', space=smem, size = 0x200, scoped, tag = 'output window, operand 0, single buffered']
    #allocation4 [shape = 's32[1]{0}', space=sflag, size = 0x4, scoped, tag = 'scoped memory for tpu_custom_call.1']
    %7 = vsyncpa [#allocation4], 0
    // Predicated region
    $region2: #{tpu_custom_call.1} parent=1 // pred_check
      _
    $region3: #{tpu_custom_call.1} parent=1 // pred_check_branch
      %9 = sbr.rel (0) target = $region5
    $region4: #{tpu_custom_call.1} parent=1 // pred_region
      %s10 = sadd.s32 0, 0
      %p11 = scmp.lt.s32.totalorder %s10, 0
      %s12 = scalar_select %p11, %s10, 0
      %s13 = smul.addr %s12, 8
      %s14 = scalar_lea.vmem %s0, %s13
      %s15 = sadd.s32 0, 0
    $region5: #{tpu_custom_call.1} parent=1 // pred_fallthru
      _
    // Predicated region
    $region6: #{tpu_custom_call.1} parent=1 // pred_check
      _
    $region7: #{tpu_custom_call.1} parent=1 // pred_check_branch
      %17 = sbr.rel (0) target = $region9
    $region8: #{tpu_custom_call.1} parent=1 // pred_region
      %s18 = sadd.s32 0, 0
      %p19 = scmp.lt.s32.totalorder %s18, 0
      %s20 = scalar_select %p19, %s18, 0
      %s21 = smul.addr %s20, 8
      %s22 = scalar_lea.vmem %s1, %s21
      %s23 = sadd.s32 0, 0
    $region9: #{tpu_custom_call.1} parent=1 // pred_fallthru
      _
    %s24 = sadd.s32 0, 0
    %p25 = scmp.lt.s32.totalorder %s24, 0
    %s26 = scalar_select %p25, %s24, 0
    %s27 = smul.addr %s26, 8
    %s28 = scalar_lea.vmem %s0, %s27
    %s29 = sadd.s32 0, 0
    %p30 = scmp.lt.s32.totalorder %s29, 0
    %s31 = scalar_select %p30, %s29, 0
    %s32 = smul.addr %s31, 8
    %s33 = scalar_lea.vmem %s1, %s32
    %s34 = sadd.s32 0, 0
    %p35 = scmp.lt.s32.totalorder %s34, 0
    %s36 = scalar_select %p35, %s34, 0
    %s37 = smul.addr %s36, 8
    %s38 = scalar_lea.vmem %s0, %s37
    %s39 = sadd.s32 0, 0
    %s40 = sadd.s32 0, 0
    %p41 = scmp.lt.s32.totalorder %s40, 0
    %s42 = scalar_select %p41, %s40, 0
    %s43 = smul.addr %s42, 8
    %s44 = scalar_lea.vmem %s1, %s43
    %s45 = sadd.s32 0, 0
    %p46 = scmp.eq.s32.totalorder 0, 0
    // Predicated region
    $region10: #{tpu_custom_call.1} parent=1 // pred_check
      %p47 = pneg %p46
    $region11: #{tpu_custom_call.1} parent=1 // pred_check_branch
      %49 = sbr.rel (%p47) target = $region13
    $region12: #{tpu_custom_call.1} parent=1 // pred_region
      %vm50 = vcmask 7168
      %51 = vst.msk [vmem:[#allocation2] sm:$0xff] %vm50, 0.0
    $region13: #{tpu_custom_call.1} parent=1 // pred_fallthru
      _
    %v52 = vld [vmem:[%s38] sm:$0xff]
    %v53 = vld [vmem:[%s44] sm:$0xff]
    %vm54 = vcmask 39936
    %v55 = vsel %vm54, %v52, -inf
    %56 = vmax.xlane.f32.xlu0 %v55
    %v57 = vpop.xlane.xlu0 %56
    %v58 = vsub.f32 %v52, %v57
    %v59 = vmul.f32 %v58, 1.442695
    %v60 = vpow.pop %v59
    %v61 = vsel %vm54, %v60, 0.0
    %62 = vadd.xlane.f32.xlu0 %v61
    %v63 = vpop.xlane.xlu0 %62
    %v64 = vlog2.pop %v63
    %v65 = vmul.f32 %v64, 0.6931472
    %v66 = vadd.f32 %v57, %v65
    %v67 = vlaneseq
    %v68 = vand.u32 %v67, 127
    %69 = vset.pattern.permute.xlu0 0
    %70 = vperm.xlu0 %69, %v53
    %v71 = vpop.permute.xlu0 %70
    %vm72 = vcmp.eq.s32.totalorder %v68, %v71
    %v73 = vsel %vm72, %v52, 0.0
    %v74 = vsel %vm54, %v73, 0.0
    %75 = vadd.xlane.f32.xlu0 %v74
    %v76 = vpop.xlane.xlu0 %75
    %v77 = vsel %vm54, %v52, 0.0
    %78 = vadd.xlane.f32.xlu0 %v77
    %v79 = vpop.xlane.xlu0 %78
    %v80 = vmul.f32 %v79, 0.025
    %v81 = vsub.f32 %v66, %v80
    %v82 = vmul.f32 %v76, 0.875
    %v83 = vsub.f32 %v81, %v82
    %s84 = sadd.s32 0, 0
    %s85 = smul.u32 %s84, 8
    %v86 = vlaneseq
    %v87 = vshrl.u32 %v86, 7
    %v88 = vstv %s85
    %v89 = vadd.s32 %v87, %v88
    %vm90 = vcmp.lt.s32.totalorder %v89, 8
    %v91 = vsel %vm90, %v83, 0.0
    %v92 = vld [vmem:[#allocation2] sm:$0xff]
    %v93 = vadd.f32 %v92, %v91
    %vm94 = vcmask 7168
    %95 = vst.msk [vmem:[#allocation2] sm:$0xff] %vm94, %v93
    // Predicated region
    $region14: #{tpu_custom_call.1} parent=1 // pred_check
      %p96 = pneg %p46
    $region15: #{tpu_custom_call.1} parent=1 // pred_check_branch
      %98 = sbr.rel (%p96) target = $region17
    $region16: #{tpu_custom_call.1} parent=1 // pred_region
      %v99 = vld [vmem:[#allocation2] sm:$0xff]
      %v100 = vsel %vm94, %v99, 0.0
      %101 = vadd.xlane.f32.xlu0 %v100
      %v102 = vpop.xlane.xlu0 %101
      %v103 = vrot.slane %v102, 4
      %v104 = vadd.f32 %v102, %v103
      %v105 = vrot.slane %v104, 2
      %v106 = vadd.f32 %v104, %v105
      %v107 = vrot.slane %v106, 1
      %v108 = vadd.f32 %v106, %v107
      %s109 = vtos %v108
      %s110 = scalar_lea.smem [#allocation3], 0
      %111 = sst [smem:[%s110]] %s109
    $region17: #{tpu_custom_call.1} parent=1 // pred_fallthru
      _
    // Predicated region
    $region18: #{tpu_custom_call.1} parent=1 // pred_check
      _
    $region19: #{tpu_custom_call.1} parent=1 // pred_check_branch
      %113 = sbr.rel (0) target = $region21
    $region20: #{tpu_custom_call.1} parent=1 // pred_region
      %s115 = ssub.s32 16, 16
      %116 = vsyncadd [#allocation4], %s115
      %119 = dma.smem_to_hbm [#allocation3], 16, %s2, [#allocation4]
    $region21: #{tpu_custom_call.1} parent=1 // pred_fallthru
      _
    // Predicated region
    $region22: #{tpu_custom_call.1} parent=1 // pred_check
      _
    $region23: #{tpu_custom_call.1} parent=1 // pred_check_branch
      %121 = sbr.rel (0) target = $region25
    $region24: #{tpu_custom_call.1} parent=1 // pred_region
      %122 = dma.done [#allocation4], 16
    $region25: #{tpu_custom_call.1} parent=1 // pred_fallthru
      _
    %123 = sfence
    %124 = vsyncpa [#allocation4], 1

</llo_original>
